<compile_context>
chip_gen: v7x
topology: tpu7x:2x2x1
jax: 0.10.0
libtpu: 0.0.40
codegen_flags: <defaults>
</compile_context>

<pallas_src>
import math

import numpy as np
import jax
import jax.numpy as jnp
from jax.experimental import pallas as pl
from jax.experimental.pallas import tpu as pltpu

_LEAKY_SLOPE = 0.01                 # torch nn.LeakyReLU() default negative_slope
_MM_DTYPE = jnp.bfloat16            # MXU operand dtype (accumulation stays f32)
_VMEM_LIMIT = 32 * 1024 * 1024


# ----------------------------------------------------------------------------
# pltpu.roll direction probe (run once, eagerly, cached as a static python int)
# ----------------------------------------------------------------------------
def _probe_roll_kernel(o_ref):
    v = jax.lax.broadcasted_iota(jnp.int32, (8, 128), 1)
    o_ref[...] = pltpu.roll(v, 1, axis=1)


_ROLL_SIGN_CACHE = []


def _roll_sign():
    """Resolve pltpu.roll's shift direction once.

    -1 : pltpu.roll matches jnp.roll (y[i] = x[i - shift])
    +1 : opposite direction
    None: fall back to jnp.roll with STATIC shifts (correct, slower).
    """
    if not _ROLL_SIGN_CACHE:
        try:
            out = pl.pallas_call(
                _probe_roll_kernel,
                out_shape=jax.ShapeDtypeStruct((8, 128), jnp.int32),
            )()
            first = int(jax.device_get(out)[0, 0])
            sign = -1 if first == 127 else (1 if first == 1 else None)
        except Exception:                      # pragma: no cover
            sign = None
        _ROLL_SIGN_CACHE.append(sign)
    return _ROLL_SIGN_CACHE[0]


# ----------------------------------------------------------------------------
# Constant per-(taps, h, w, Mt) boundary masks (numpy cache -> bf16 constants)
# ----------------------------------------------------------------------------
_AUX_CACHE = {}


def _boundary_masks(taps, h, w, mt):
    """(taps, 1, Mt) {0,1} masks zeroing rolled-in out-of-image lanes
    (replaces the zero padding of a 3x3 'SAME' convolution)."""
    key = (taps, h, w, mt)
    if key not in _AUX_CACHE:
        lane = np.arange(mt)
        yy = (lane // w) % h
        xx = lane % w
        rows = [((yy + dy >= 0) & (yy + dy < h) & (xx + dx >= 0) & (xx + dx < w))
                for dy, dx in taps]
        _AUX_CACHE[key] = np.stack(rows).astype(np.float32).reshape(
            len(taps), 1, mt)
    return _AUX_CACHE[key]


# ----------------------------------------------------------------------------
# The fused conv kernel
# ----------------------------------------------------------------------------
def _make_conv_kernel(taps, img_w, pre_act, residual, has_nin, stack, roll_sign):
    """Fused NormConv2d kernel on a (C, M_tile) tile.

    taps     : static list of (dy, dx) conv taps (len 1 for 1x1 convs)
    pre_act  : apply LeakyReLU to the x tile once
    has_nin  : fuse the VunetRNB 1x1 projection of `a` + channel concat
    residual : add the (pre-activation) x tile to the conv output
    stack    : write the rolled+masked taps into a (T*Cin, Mt) bf16 VMEM
               scratch and run ONE deep-K matmul; else per-tap dots.
    """
    n_taps = len(taps)

    def leaky(t):
        return jnp.where(t >= 0, t, _LEAKY_SLOPE * t)

    def kernel(*refs):
        it = iter(refs)
        x_ref = next(it)
        if has_nin:
            a_ref, wn_ref, bn_ref = next(it), next(it), next(it)
        mask_ref = next(it) if n_taps > 1 else None
        w_ref, b_ref, o_ref = next(it), next(it), next(it)
        p_ref = next(it) if stack else None              # (T*Cin, Mt) bf16

        x = x_ref[...]                                   # (Cx, Mt) float32
        u = leaky(x) if pre_act else x                   # activation once
        if has_nin:                                      # fused 1x1 nin(act(a))
            aa = leaky(a_ref[...]).astype(_MM_DTYPE)
            ap = jnp.dot(wn_ref[...], aa,
                         preferred_element_type=jnp.float32) + bn_ref[...]
            u = jnp.concatenate([u, leaky(ap)], axis=0)  # x-channels first
        u_mm = u.astype(_MM_DTYPE)                       # bf16 ONCE, pre-taps
        cin = u_mm.shape[0]
        mt = u_mm.shape[-1]

        def tap(t, dy, dx):
            off = dy * img_w + dx
            if off == 0:
                return u_mm
            if roll_sign is None:
                sh = jnp.roll(u_mm, -off, axis=1)        # static-shift fallback
            else:
                sh = pltpu.roll(u_mm, (roll_sign * off) % mt, axis=1)
            return sh * mask_ref[t]                      # bf16 {0,1} mask

        if n_taps == 1:
            y = jnp.dot(w_ref[...], u_mm, preferred_element_type=jnp.float32)
        elif stack:
            for t, (dy, dx) in enumerate(taps):
                p_ref[t * cin:(t + 1) * cin, :] = tap(t, dy, dx)
            y = jnp.dot(w_ref[...], p_ref[...],
                        preferred_element_type=jnp.float32)
        else:                                            # tiny Cin=8 fallback
            y = None
            for t, (dy, dx) in enumerate(taps):
                part = jnp.dot(w_ref[t], tap(t, dy, dx),
                               preferred_element_type=jnp.float32)
                y = part if y is None else y + part

        y = y + b_ref[...]                               # gamma/beta pre-folded
        if residual:
            y = y + x
        o_ref[...] = y.astype(o_ref.dtype)

    return kernel


def _tile_plan(n, h, w):
    """Return (Mt, grid, M_pad): lane-dense tiles, whole images per tile.

    2-step 'parallel' grid on the larger maps (v7x megacore), a single tile
    otherwise; lanes are zero-padded to a multiple of 128 for tiny maps."""
    hw = h * w
    m = n * hw
    if m % 128 == 0 and hw % 128 == 0 and n % 2 == 0 and m >= 512:
        return (n // 2) * hw, 2, m
    if m % 128 == 0:
        return m, 1, m
    m_pad = ((m + 127) // 128) * 128
    return m_pad, 1, m_pad


def conv_cm(x, prep, *, pre_act=False, residual=False, nin=None, a=None):
    """Fused NormConv2d on a (C, N, H, W) tensor (single pallas_call).

    Optionally fuses a LeakyReLU pre-activation, the VunetRNB 1x1 `nin`
    projection of `a` + channel concat, and the residual add of x.
    gamma/beta are already folded into prep["wt"] / prep["b"]."""
    cx, n, h, w = x.shape
    hw, m = h * w, n * h * w
    taps = prep["taps"]
    cin, cout, cout_pad = prep["cin"], prep["cout"], prep["wt"].shape[0]
    stack = len(taps) > 1 and cin % 16 == 0
    mt, grid_n, m_pad = _tile_plan(n, h, w)

    if residual:
        assert cout == cx and cout_pad == cout
    assert cin == cx + (nin["cout"] if nin is not None else 0)

    def lanes(t):
        tm = t.reshape(t.shape[0], m)
        return jnp.pad(tm, ((0, 0), (0, m_pad - m))) if m_pad != m else tm

    args = [lanes(x)]
    in_specs = [pl.BlockSpec((cx, mt), lambda i: (0, i))]
    flops = 2 * m_pad * cout_pad * len(taps) * cin
    bytes_acc = 4 * m_pad * (cx + cout_pad) + 2 * int(prep["wt"].size) + 4 * cout_pad

    if nin is not None:
        assert nin["wt"].shape[0] == nin["cout"]         # no Cout padding here
        cproj, ca = nin["cout"], nin["cin"]
        args += [lanes(a), nin["wt"], nin["b"]]
        in_specs += [pl.BlockSpec((ca, mt), lambda i: (0, i)),
                     pl.BlockSpec(nin["wt"].shape, lambda i: (0, 0)),
                     pl.BlockSpec(nin["b"].shape, lambda i: (0, 0))]
        flops += 2 * m_pad * ca * cproj
        bytes_acc += 4 * m_pad * ca + 2 * int(nin["wt"].size)

    if len(taps) > 1:
        mask = jnp.asarray(_boundary_masks(taps, h, w, mt), dtype=_MM_DTYPE)
        args.append(mask)
        in_specs.append(pl.BlockSpec(mask.shape, lambda i: (0, 0, 0)))
        bytes_acc += 2 * int(mask.size)

    w_arg = prep["wt"] if (stack or len(taps) == 1) else prep["wt3"]
    args += [w_arg, prep["b"]]
    in_specs += [pl.BlockSpec(w_arg.shape,
                              (lambda i: (0, 0)) if w_arg.ndim == 2
                              else (lambda i: (0, 0, 0))),
                 pl.BlockSpec(prep["b"].shape, lambda i: (0, 0))]

    kernel = _make_conv_kernel(taps, w, pre_act, residual, nin is not None,
                               stack, _roll_sign() if len(taps) > 1 else None)
    out = pl.pallas_call(
        kernel,
        out_shape=jax.ShapeDtypeStruct((cout_pad, m_pad), jnp.float32),
        grid=(grid_n,),
        in_specs=in_specs,
        out_specs=pl.BlockSpec((cout_pad, mt), lambda i: (0, i)),
        scratch_shapes=([pltpu.VMEM((len(taps) * cin, mt), _MM_DTYPE)]
                        if stack else []),
        compiler_params=pltpu.CompilerParams(
            dimension_semantics=("parallel",),
            vmem_limit_bytes=_VMEM_LIMIT),
        cost_estimate=pl.CostEstimate(flops=int(flops), transcendentals=0,
                                      bytes_accessed=int(bytes_acc)),
    )(*args)
    if cout_pad != cout or m_pad != m:
        out = out[:cout, :m]
    return out.reshape(cout, n, h, w)


# ----------------------------------------------------------------------------
# Module building blocks ((C, N, H, W) internal layout)
# ----------------------------------------------------------------------------
def vunet_rnb(x, a, p, *, residual):
    """VunetRNB:  residual=True : out = x + conv3x3(act(cat([x, nin(act(a))])))
                  residual=False: out = x + conv3x3(act(x))
    Dropout(p=0) is the identity and omitted.  One fused pallas_call."""
    if residual:
        return conv_cm(x, p["conv"], pre_act=True, residual=True,
                       nin=p["nin"], a=a)
    return conv_cm(x, p["conv"], pre_act=True, residual=True)


def space_to_depth(x, bs=2):
    c, n, h, w = x.shape
    x = x.reshape(c, n, h // bs, bs, w // bs, bs)
    x = jnp.transpose(x, (3, 5, 0, 1, 2, 4))
    return x.reshape(bs * bs * c, n, h // bs, w // bs)


def depth_to_space(x, bs=2):
    c, n, h, w = x.shape
    co = c // (bs * bs)
    x = x.reshape(bs, bs, co, n, h, w)
    x = jnp.transpose(x, (2, 3, 4, 0, 5, 1))
    return x.reshape(co, n, h * bs, w * bs)


def _to_cm(x):      # NCHW -> (C, N, H, W)
    return jnp.transpose(x, (1, 0, 2, 3))


def _to_nchw(x):    # (C, N, H, W) -> NCHW
    return jnp.transpose(x, (1, 0, 2, 3))


# ----------------------------------------------------------------------------
# Parameter init (deterministic) + prep (gamma/beta folding, weight layout)
# ----------------------------------------------------------------------------
def _init_norm_conv(key, cin, cout, k):
    kw_, kb = jax.random.split(key)
    bound = 1.0 / math.sqrt(cin * k * k)
    return {
        "w": jax.random.uniform(kw_, (k, k, cin, cout), jnp.float32, -bound, bound),
        "b": jax.random.uniform(kb, (cout,), jnp.float32, -bound, bound),
        "gamma": jnp.ones((cout,), jnp.float32),   # NormConv2d scale (init = 1)
        "beta": jnp.zeros((cout,), jnp.float32),   # NormConv2d shift (init = 0)
    }


def _taps(k):
    r = k // 2
    return tuple((dy, dx) for dy in range(-r, r + 1) for dx in range(-r, r + 1))


def _flatten_conv(wf, bf):
    """Lay the (k,k,Cin,Cout) weight out for the kernel:
       wt  : (Cout_pad, T*Cin)  bf16 flat weight (column band t = tap t)
       wt3 : (T, Cout_pad, Cin) bf16 per-tap weight (tiny-Cin fallback)
       Cout padded up to a multiple of 8; padded rows are zero."""
    kh, kw, cin, cout = wf.shape
    cout_pad = ((cout + 7) // 8) * 8
    wt = jnp.transpose(wf.reshape(kh * kw, cin, cout), (0, 2, 1))      # (T,Cout,Cin)
    w_flat = jnp.transpose(wt, (1, 0, 2)).reshape(cout, kh * kw * cin)
    w_flat = jnp.pad(w_flat, ((0, cout_pad - cout), (0, 0))).astype(_MM_DTYPE)
    wt3 = jnp.pad(wt, ((0, 0), (0, cout_pad - cout), (0, 0))).astype(_MM_DTYPE)
    b_pad = jnp.pad(bf, (0, cout_pad - cout)).reshape(cout_pad, 1)
    return {"wt": w_flat, "wt3": wt3, "b": b_pad.astype(jnp.float32),
            "taps": _taps(kh), "cin": cin, "cout": cout}


def _prep_conv(p):
    """Fold NormConv2d gamma/beta into weight/bias (w' = w*g, b' = b*g + beta)."""
    wf = p["w"] * p["gamma"]
    bf = p["b"] * p["gamma"] + p["beta"]
    return _flatten_conv(wf, bf)


def _prep_upsample(p):
    """Fold nearest-x2 upsample + 3x3 NormConv into ONE 3x3 conv evaluated at
    LOW resolution with 4*Cout channels (one block per output-pixel parity);
    depth_to_space afterwards restores the full-resolution map."""
    wf = p["w"] * p["gamma"]
    bf = p["b"] * p["gamma"] + p["beta"]
    _, _, cin, cout = wf.shape
    emap = {0: (-1, 0, 0), 1: (0, 0, 1)}   # parity -> tap(0..2) -> low-res offset
    wu = jnp.zeros((3, 3, cin, 4 * cout), jnp.float32)
    for py in (0, 1):
        for px in (0, 1):
            acc = jnp.zeros((3, 3, cin, cout), jnp.float32)
            for dy in range(3):
                for dx in range(3):
                    acc = acc.at[emap[py][dy] + 1, emap[px][dx] + 1].add(wf[dy, dx])
            s = (py * 2 + px) * cout
            wu = wu.at[:, :, :, s:s + cout].set(acc)
    bu = jnp.tile(bf, 4)
    return _flatten_conv(wu, bu)


# ----------------------------------------------------------------------------
# DecDown
# ----------------------------------------------------------------------------
class DecDownPallas:
    def __init__(self, stages, in_channels, last_channels, out_channels,
                 n_latent_stages=2, *, key):
        self.n_rnb = 2
        self.n_stages = stages
        self.n_latent_stages = n_latent_stages
        _roll_sign()  # resolve pltpu.roll direction eagerly (cached, jit-safe)

        keys = iter(jax.random.split(key, 512))
        nc = lambda cin, cout, k: _init_norm_conv(next(keys), cin, cout, k)

        def rnb(channels, a_channels=0, residual=False):
            d = {}
            if residual:
                d["nin"] = _prep_conv(nc(a_channels, channels, 1))
                d["conv"] = _prep_conv(nc(2 * channels, channels, 3))
            else:
                d["conv"] = _prep_conv(nc(channels, channels, 3))
            return d

        c0 = in_channels  # n_latent_channels_in
        c = in_channels
        self.nin = _prep_conv(nc(in_channels, in_channels, 1))
        self.blocks, self.ups = [], []
        self.latent_nins, self.auto_lp, self.auto_blocks = {}, {}, {}
        for i in range(stages):
            self.blocks.append(rnb(c, c, True))
            if i < n_latent_stages:
                scale = f"l_{i}"
                self.latent_nins[scale] = _prep_conv(nc(2 * c0, c0, 1))
                clp, cb = [], []
                for l in range(4):
                    clp.append(_prep_conv(nc(4 * c0, c0, 3)))
                    if l == 0:
                        cb.append(rnb(c0, residual=False))
                    else:
                        cb.append(rnb(4 * c0, c0, True))
                self.auto_lp[scale] = clp
                self.auto_blocks[scale] = cb
            self.blocks.append(rnb(c, c, True))
            if i + 1 < stages:
                out_c = min(c, last_channels * 2 ** (stages - (i + 2)))
                self.ups.append(_prep_upsample(nc(c, out_c, 3)))
                c = out_c
        self.out_conv = _prep_conv(nc(last_channels, out_channels, 3))

    # --- group helpers (channel axis = 0 in the (C, N, H, W) layout) ---
    @staticmethod
    def _split_groups(x):
        sec = x.shape[0]
        y = space_to_depth(x)
        return [y[i * sec:(i + 1) * sec] for i in range(y.shape[0] // sec)]

    @staticmethod
    def _merge_groups(groups):
        return depth_to_space(jnp.concatenate(groups, axis=0))

    def forward(self, gs, zs_posterior, training, noise_key):
        # Public I/O uses the PyTorch NCHW convention; compute in (C, N, H, W).
        gs = [_to_cm(g) for g in gs]
        zs_posterior = [_to_cm(z) for z in zs_posterior]
        nkeys = iter(jax.random.split(noise_key, 8 * max(self.n_latent_stages, 1)))

        hs, ps, zs = [], [], []
        h = conv_cm(gs[-1], self.nin)
        for i in range(self.n_stages):
            h = vunet_rnb(h, gs.pop(), self.blocks[2 * i], residual=True)
            hs.append(h)
            if i < self.n_latent_stages:
                scale = f"l_{i}"
                if training:
                    zs_posterior_groups = self._split_groups(zs_posterior[0])
                p_groups, z_groups = [], []
                pre = vunet_rnb(h, None, self.auto_blocks[scale][0], residual=False)
                # TODO(synk): space_to_depth/depth_to_space remain plain XLA
                # transposes between kernels (not folded into conv BlockSpecs).
                p_features = space_to_depth(pre)
                for l in range(4):
                    p_group = conv_cm(p_features, self.auto_lp[scale][l])
                    p_groups.append(p_group)
                    # latent_sample: mean + 1.0 * eps
                    # TODO(synk): torch.randn_like replaced by jax.random.normal
                    # (deterministic per key, not bit-identical to torch RNG).
                    eps = jax.random.normal(next(nkeys), p_group.shape, p_group.dtype)
                    z_group = p_group + eps
                    z_groups.append(z_group)
                    feedback = zs_posterior_groups.pop(0) if training else z_group
                    if l + 1 < 4:
                        p_features = vunet_rnb(p_features, feedback,
                                               self.auto_blocks[scale][l + 1],
                                               residual=True)
                if training:
                    assert not zs_posterior_groups
                ps.append(self._merge_groups(p_groups))
                z_prior = self._merge_groups(z_groups)
                zs.append(z_prior)
                z = zs_posterior.pop(0) if training else z_prior
                h = jnp.concatenate([h, z], axis=0)
                h = conv_cm(h, self.latent_nins[scale])
                h = vunet_rnb(h, gs.pop(), self.blocks[2 * i + 1], residual=True)
                hs.append(h)
            else:
                h = vunet_rnb(h, gs.pop(), self.blocks[2 * i + 1], residual=True)
                hs.append(h)
            if i + 1 < self.n_stages:
                # fused nearest-x2 upsample + 3x3 NormConv, then pixel shuffle
                h = depth_to_space(conv_cm(h, self.ups[i]))
        assert not gs
        if training:
            assert not zs_posterior
        out_params = conv_cm(hs[-1], self.out_conv)
        return (_to_nchw(out_params),
                [_to_nchw(t) for t in hs],
                [_to_nchw(t) for t in ps],
                [_to_nchw(t) for t in zs])


# ----------------------------------------------------------------------------
# Reference checks (fused kernels vs lax)
# ----------------------------------------------------------------------------
def _ref_conv(x, w, b):
    y = jax.lax.conv_general_dilated(
        x, w, (1, 1), "SAME", dimension_numbers=("NCHW", "HWIO", "NCHW"))
    return y + b.reshape(1, -1, 1, 1)


def _assert_close(got, ref, name, atol=2e-2, rtol=2e-2):
    err = float(jnp.max(jnp.abs(got - ref)))
    lim = atol + rtol * float(jnp.max(jnp.abs(ref)))
    assert err <= lim, f"{name}: max abs err {err:.4g} > {lim:.4g}"


def _check_plain_conv(key, cin, cout, n, h, w):
    k1, k2, k3 = jax.random.split(key, 3)
    x = jax.random.normal(k1, (n, cin, h, w), jnp.float32)
    raw = _init_norm_conv(k2, cin, cout, 3)
    raw["gamma"] = 1.0 + 0.2 * jax.random.normal(k3, (cout,), jnp.float32)
    raw["beta"] = 0.1 * jnp.arange(cout, dtype=jnp.float32)
    got = _to_nchw(conv_cm(_to_cm(x), _prep_conv(raw)))
    ref = _ref_conv(x, raw["w"] * raw["gamma"],
                    raw["b"] * raw["gamma"] + raw["beta"])
    _assert_close(got, ref, f"conv3x3 {cin}->{cout} {h}x{w}")


def _check_upsample(key, cin, cout, n, h, w):
    k1, k2 = jax.random.split(key)
    x = jax.random.normal(k1, (n, cin, h, w), jnp.float32)
    raw = _init_norm_conv(k2, cin, cout, 3)
    got = _to_nchw(depth_to_space(conv_cm(_to_cm(x), _prep_upsample(raw))))
    xu = jnp.repeat(jnp.repeat(x, 2, axis=2), 2, axis=3)   # nearest x2
    ref = _ref_conv(xu, raw["w"], raw["b"])
    _assert_close(got, ref, "fused upsample+conv")


def _check_rnb(key, c, n, h, w):
    k1, k2, k3, k4 = jax.random.split(key, 4)
    x = jax.random.normal(k1, (n, c, h, w), jnp.float32)
    a = jax.random.normal(k2, (n, c, h, w), jnp.float32)
    raw_nin = _init_norm_conv(k3, c, c, 1)
    raw_conv = _init_norm_conv(k4, 2 * c, c, 3)
    got = _to_nchw(conv_cm(_to_cm(x), _prep_conv(raw_conv), pre_act=True,
                           residual=True, nin=_prep_conv(raw_nin), a=_to_cm(a)))
    act = lambda t: jnp.where(t >= 0, t, _LEAKY_SLOPE * t)
    ap = _ref_conv(act(a), raw_nin["w"], raw_nin["b"])
    u = act(jnp.concatenate([x, ap], axis=1))
    ref = x + _ref_conv(u, raw_conv["w"], raw_conv["b"])
    _assert_close(got, ref, "fused RNB")


# ----------------------------------------------------------------------------
# Demo
# ----------------------------------------------------------------------------
if __name__ == "__main__":
    stages, n_latent = 3, 2
    in_ch, last_ch, out_ch = 16, 8, 6
    N = 2

    root = jax.random.PRNGKey(0)
    k_params, k_data, k_noise, k_test = jax.random.split(root, 4)

    # kernel correctness self-checks covering: roll path, 2-step grid, padded
    # lanes (stack + per-tap fallback), padded Cout, fused upsample, fused RNB.
    t = jax.random.split(k_test, 5)
    _check_plain_conv(t[0], cin=16, cout=16, n=N, h=8, w=8)
    _check_plain_conv(t[1], cin=16, cout=16, n=N, h=16, w=16)
    _check_plain_conv(t[2], cin=64, cout=16, n=N, h=4, w=4)
    _check_plain_conv(t[3], cin=8, cout=6, n=N, h=4, w=4)
    _check_upsample(t[4], cin=16, cout=16, n=N, h=8, w=8)
    _check_rnb(jax.random.fold_in(k_test, 7), c=16, n=N, h=8, w=8)

    model = DecDownPallas(stages, in_ch, last_ch, out_ch,
                          n_latent_stages=n_latent, key=k_params)

    # gs: encoder features (NCHW), shallow (large) first, deep (small) last —
    # 2 per stage; gs[-1] also feeds the initial 1x1 nin.
    g_shapes = [(N, 8, 32, 32), (N, 8, 32, 32),
                (N, 16, 16, 16), (N, 16, 16, 16),
                (N, 16, 8, 8), (N, 16, 8, 8)]
    dkeys = jax.random.split(k_data, len(g_shapes))
    gs = [jax.random.normal(k, s, jnp.float32) for k, s in zip(dkeys, g_shapes)]

    fwd = jax.jit(lambda gs_, key_: model.forward(list(gs_), [],
                                                  training=False,
                                                  noise_key=key_))
    out_params, hs, ps, zs = fwd(tuple(gs), k_noise)
    jax.block_until_ready((out_params, hs, ps, zs))

    assert out_params.shape == (N, out_ch, 32, 32), out_params.shape
    assert len(hs) == 2 * stages and len(ps) == n_latent and len(zs) == n_latent
    assert hs[0].shape == (N, 16, 8, 8) and hs[-1].shape == (N, 8, 32, 32)
    assert ps[0].shape == (N, 16, 8, 8) and ps[1].shape == (N, 16, 16, 16)
    assert all(bool(jnp.isfinite(t_).all())
               for t_ in (out_params, hs[-1], ps[-1], zs[-1]))

    print("KERNEL_OK")
</pallas_src>

<mosaic_0001>
module attributes {stable_mosaic.version = 11 : i64} {
  func.func @kernel(%arg0: i32, %arg1: memref<16x128xf32, #tpu.memory_space<vmem>>, %arg2: memref<9x1x128xbf16, #tpu.memory_space<vmem>>, %arg3: memref<16x144xbf16, #tpu.memory_space<vmem>>, %arg4: memref<16x1xf32, #tpu.memory_space<vmem>>, %arg5: memref<16x128xf32, #tpu.memory_space<vmem>>, %arg6: memref<144x128xbf16, #tpu.memory_space<vmem>>) attributes {dimension_semantics = [#tpu.dimension_semantics<parallel>], iteration_bounds = array<i64: 1>, scalar_prefetch = 0 : i64, scratch_operands = 1 : i64, tpu.core_type = #tpu.core_type<tc>, window_params = [{transform_indices = @transform_0, window_bounds = array<i64: 16, 128>}, {pipeline_mode = #tpu.pipeline_mode<synchronous>, transform_indices = @transform_1, window_bounds = array<i64: 9, 1, 128>}, {pipeline_mode = #tpu.pipeline_mode<synchronous>, transform_indices = @transform_2, window_bounds = array<i64: 16, 144>}, {pipeline_mode = #tpu.pipeline_mode<synchronous>, transform_indices = @transform_3, window_bounds = array<i64: 16, 1>}, {transform_indices = @transform_4, window_bounds = array<i64: 16, 128>}]} {
    %c0 = arith.constant 0 : index
    %c0_0 = arith.constant 0 : index
    %0 = vector.load %arg1[%c0, %c0_0] : memref<16x128xf32, #tpu.memory_space<vmem>>, vector<16x128xf32>
    %1 = arith.truncf %0 : vector<16x128xf32> to vector<16x128xbf16>
    %2 = vector.extract_strided_slice %1 {offsets = [0, 119], sizes = [16, 9], strides = [1, 1]} : vector<16x128xbf16> to vector<16x9xbf16>
    %3 = vector.extract_strided_slice %1 {offsets = [0, 0], sizes = [16, 119], strides = [1, 1]} : vector<16x128xbf16> to vector<16x119xbf16>
    %4 = tpu.concatenate %2, %3 in 1 : vector<16x9xbf16>, vector<16x119xbf16> -> vector<16x128xbf16>
    %c0_1 = arith.constant 0 : index
    %c0_2 = arith.constant 0 : index
    %c0_3 = arith.constant 0 : index
    %5 = vector.load %arg2[%c0_1, %c0_2, %c0_3] : memref<9x1x128xbf16, #tpu.memory_space<vmem>>, vector<1x1x128xbf16>
    %6 = vector.shape_cast %5 : vector<1x1x128xbf16> to vector<1x128xbf16>
    %7 = vector.broadcast %6 : vector<1x128xbf16> to vector<16x128xbf16>
    %8 = arith.mulf %4, %7 : vector<16x128xbf16>
    %c0_4 = arith.constant 0 : index
    %c0_5 = arith.constant 0 : index
    %9 = vector.load %arg6[%c0_4, %c0_5] : memref<144x128xbf16, #tpu.memory_space<vmem>>, vector<16x128xbf16>
    tpu.vector_store %arg6[%c0_4, %c0_5], %8 {strides = array<i32>} : memref<144x128xbf16, #tpu.memory_space<vmem>>, vector<16x128xbf16>,
    %10 = vector.extract_strided_slice %1 {offsets = [0, 120], sizes = [16, 8], strides = [1, 1]} : vector<16x128xbf16> to vector<16x8xbf16>
    %11 = vector.extract_strided_slice %1 {offsets = [0, 0], sizes = [16, 120], strides = [1, 1]} : vector<16x128xbf16> to vector<16x120xbf16>
    %12 = tpu.concatenate %10, %11 in 1 : vector<16x8xbf16>, vector<16x120xbf16> -> vector<16x128xbf16>
    %c1 = arith.constant 1 : index
    %c0_6 = arith.constant 0 : index
    %c0_7 = arith.constant 0 : index
    %13 = vector.load %arg2[%c1, %c0_6, %c0_7] : memref<9x1x128xbf16, #tpu.memory_space<vmem>>, vector<1x1x128xbf16>
    %14 = vector.shape_cast %13 : vector<1x1x128xbf16> to vector<1x128xbf16>
    %15 = vector.broadcast %14 : vector<1x128xbf16> to vector<16x128xbf16>
    %16 = arith.mulf %12, %15 : vector<16x128xbf16>
    %c16 = arith.constant 16 : index
    %c0_8 = arith.constant 0 : index
    %17 = vector.load %arg6[%c16, %c0_8] : memref<144x128xbf16, #tpu.memory_space<vmem>>, vector<16x128xbf16>
    tpu.vector_store %arg6[%c16, %c0_8], %16 {strides = array<i32>} : memref<144x128xbf16, #tpu.memory_space<vmem>>, vector<16x128xbf16>,
    %18 = vector.extract_strided_slice %1 {offsets = [0, 121], sizes = [16, 7], strides = [1, 1]} : vector<16x128xbf16> to vector<16x7xbf16>
    %19 = vector.extract_strided_slice %1 {offsets = [0, 0], sizes = [16, 121], strides = [1, 1]} : vector<16x128xbf16> to vector<16x121xbf16>
    %20 = tpu.concatenate %18, %19 in 1 : vector<16x7xbf16>, vector<16x121xbf16> -> vector<16x128xbf16>
    %c2 = arith.constant 2 : index
    %c0_9 = arith.constant 0 : index
    %c0_10 = arith.constant 0 : index
    %21 = vector.load %arg2[%c2, %c0_9, %c0_10] : memref<9x1x128xbf16, #tpu.memory_space<vmem>>, vector<1x1x128xbf16>
    %22 = vector.shape_cast %21 : vector<1x1x128xbf16> to vector<1x128xbf16>
    %23 = vector.broadcast %22 : vector<1x128xbf16> to vector<16x128xbf16>
    %24 = arith.mulf %20, %23 : vector<16x128xbf16>
    %c32 = arith.constant 32 : index
    %c0_11 = arith.constant 0 : index
    %25 = vector.load %arg6[%c32, %c0_11] : memref<144x128xbf16, #tpu.memory_space<vmem>>, vector<16x128xbf16>
    tpu.vector_store %arg6[%c32, %c0_11], %24 {strides = array<i32>} : memref<144x128xbf16, #tpu.memory_space<vmem>>, vector<16x128xbf16>,
    %26 = vector.extract_strided_slice %1 {offsets = [0, 127], sizes = [16, 1], strides = [1, 1]} : vector<16x128xbf16> to vector<16x1xbf16>
    %27 = vector.extract_strided_slice %1 {offsets = [0, 0], sizes = [16, 127], strides = [1, 1]} : vector<16x128xbf16> to vector<16x127xbf16>
    %28 = tpu.concatenate %26, %27 in 1 : vector<16x1xbf16>, vector<16x127xbf16> -> vector<16x128xbf16>
    %c3 = arith.constant 3 : index
    %c0_12 = arith.constant 0 : index
    %c0_13 = arith.constant 0 : index
    %29 = vector.load %arg2[%c3, %c0_12, %c0_13] : memref<9x1x128xbf16, #tpu.memory_space<vmem>>, vector<1x1x128xbf16>
    %30 = vector.shape_cast %29 : vector<1x1x128xbf16> to vector<1x128xbf16>
    %31 = vector.broadcast %30 : vector<1x128xbf16> to vector<16x128xbf16>
    %32 = arith.mulf %28, %31 : vector<16x128xbf16>
    %c48 = arith.constant 48 : index
    %c0_14 = arith.constant 0 : index
    %33 = vector.load %arg6[%c48, %c0_14] : memref<144x128xbf16, #tpu.memory_space<vmem>>, vector<16x128xbf16>
    tpu.vector_store %arg6[%c48, %c0_14], %32 {strides = array<i32>} : memref<144x128xbf16, #tpu.memory_space<vmem>>, vector<16x128xbf16>,
    %c64 = arith.constant 64 : index
    %c0_15 = arith.constant 0 : index
    %34 = vector.load %arg6[%c64, %c0_15] : memref<144x128xbf16, #tpu.memory_space<vmem>>, vector<16x128xbf16>
    tpu.vector_store %arg6[%c64, %c0_15], %1 {strides = array<i32>} : memref<144x128xbf16, #tpu.memory_space<vmem>>, vector<16x128xbf16>,
    %35 = vector.extract_strided_slice %1 {offsets = [0, 1], sizes = [16, 127], strides = [1, 1]} : vector<16x128xbf16> to vector<16x127xbf16>
    %36 = vector.extract_strided_slice %1 {offsets = [0, 0], sizes = [16, 1], strides = [1, 1]} : vector<16x128xbf16> to vector<16x1xbf16>
    %37 = tpu.concatenate %35, %36 in 1 : vector<16x127xbf16>, vector<16x1xbf16> -> vector<16x128xbf16>
    %c5 = arith.constant 5 : index
    %c0_16 = arith.constant 0 : index
    %c0_17 = arith.constant 0 : index
    %38 = vector.load %arg2[%c5, %c0_16, %c0_17] : memref<9x1x128xbf16, #tpu.memory_space<vmem>>, vector<1x1x128xbf16>
    %39 = vector.shape_cast %38 : vector<1x1x128xbf16> to vector<1x128xbf16>
    %40 = vector.broadcast %39 : vector<1x128xbf16> to vector<16x128xbf16>
    %41 = arith.mulf %37, %40 : vector<16x128xbf16>
    %c80 = arith.constant 80 : index
    %c0_18 = arith.constant 0 : index
    %42 = vector.load %arg6[%c80, %c0_18] : memref<144x128xbf16, #tpu.memory_space<vmem>>, vector<16x128xbf16>
    tpu.vector_store %arg6[%c80, %c0_18], %41 {strides = array<i32>} : memref<144x128xbf16, #tpu.memory_space<vmem>>, vector<16x128xbf16>,
    %43 = vector.extract_strided_slice %1 {offsets = [0, 7], sizes = [16, 121], strides = [1, 1]} : vector<16x128xbf16> to vector<16x121xbf16>
    %44 = vector.extract_strided_slice %1 {offsets = [0, 0], sizes = [16, 7], strides = [1, 1]} : vector<16x128xbf16> to vector<16x7xbf16>
    %45 = tpu.concatenate %43, %44 in 1 : vector<16x121xbf16>, vector<16x7xbf16> -> vector<16x128xbf16>
    %c6 = arith.constant 6 : index
    %c0_19 = arith.constant 0 : index
    %c0_20 = arith.constant 0 : index
    %46 = vector.load %arg2[%c6, %c0_19, %c0_20] : memref<9x1x128xbf16, #tpu.memory_space<vmem>>, vector<1x1x128xbf16>
    %47 = vector.shape_cast %46 : vector<1x1x128xbf16> to vector<1x128xbf16>
    %48 = vector.broadcast %47 : vector<1x128xbf16> to vector<16x128xbf16>
    %49 = arith.mulf %45, %48 : vector<16x128xbf16>
    %c96 = arith.constant 96 : index
    %c0_21 = arith.constant 0 : index
    %50 = vector.load %arg6[%c96, %c0_21] : memref<144x128xbf16, #tpu.memory_space<vmem>>, vector<16x128xbf16>
    tpu.vector_store %arg6[%c96, %c0_21], %49 {strides = array<i32>} : memref<144x128xbf16, #tpu.memory_space<vmem>>, vector<16x128xbf16>,
    %51 = vector.extract_strided_slice %1 {offsets = [0, 8], sizes = [16, 120], strides = [1, 1]} : vector<16x128xbf16> to vector<16x120xbf16>
    %52 = vector.extract_strided_slice %1 {offsets = [0, 0], sizes = [16, 8], strides = [1, 1]} : vector<16x128xbf16> to vector<16x8xbf16>
    %53 = tpu.concatenate %51, %52 in 1 : vector<16x120xbf16>, vector<16x8xbf16> -> vector<16x128xbf16>
    %c7 = arith.constant 7 : index
    %c0_22 = arith.constant 0 : index
    %c0_23 = arith.constant 0 : index
    %54 = vector.load %arg2[%c7, %c0_22, %c0_23] : memref<9x1x128xbf16, #tpu.memory_space<vmem>>, vector<1x1x128xbf16>
    %55 = vector.shape_cast %54 : vector<1x1x128xbf16> to vector<1x128xbf16>
    %56 = vector.broadcast %55 : vector<1x128xbf16> to vector<16x128xbf16>
    %57 = arith.mulf %53, %56 : vector<16x128xbf16>
    %c112 = arith.constant 112 : index
    %c0_24 = arith.constant 0 : index
    %58 = vector.load %arg6[%c112, %c0_24] : memref<144x128xbf16, #tpu.memory_space<vmem>>, vector<16x128xbf16>
    tpu.vector_store %arg6[%c112, %c0_24], %57 {strides = array<i32>} : memref<144x128xbf16, #tpu.memory_space<vmem>>, vector<16x128xbf16>,
    %59 = vector.extract_strided_slice %1 {offsets = [0, 9], sizes = [16, 119], strides = [1, 1]} : vector<16x128xbf16> to vector<16x119xbf16>
    %60 = vector.extract_strided_slice %1 {offsets = [0, 0], sizes = [16, 9], strides = [1, 1]} : vector<16x128xbf16> to vector<16x9xbf16>
    %61 = tpu.concatenate %59, %60 in 1 : vector<16x119xbf16>, vector<16x9xbf16> -> vector<16x128xbf16>
    %c8 = arith.constant 8 : index
    %c0_25 = arith.constant 0 : index
    %c0_26 = arith.constant 0 : index
    %62 = vector.load %arg2[%c8, %c0_25, %c0_26] : memref<9x1x128xbf16, #tpu.memory_space<vmem>>, vector<1x1x128xbf16>
    %63 = vector.shape_cast %62 : vector<1x1x128xbf16> to vector<1x128xbf16>
    %64 = vector.broadcast %63 : vector<1x128xbf16> to vector<16x128xbf16>
    %65 = arith.mulf %61, %64 : vector<16x128xbf16>
    %c128 = arith.constant 128 : index
    %c0_27 = arith.constant 0 : index
    %66 = vector.load %arg6[%c128, %c0_27] : memref<144x128xbf16, #tpu.memory_space<vmem>>, vector<16x128xbf16>
    tpu.vector_store %arg6[%c128, %c0_27], %65 {strides = array<i32>} : memref<144x128xbf16, #tpu.memory_space<vmem>>, vector<16x128xbf16>,
    %c0_28 = arith.constant 0 : index
    %c0_29 = arith.constant 0 : index
    %67 = vector.load %arg3[%c0_28, %c0_29] : memref<16x144xbf16, #tpu.memory_space<vmem>>, vector<16x144xbf16>
    %c0_30 = arith.constant 0 : index
    %c0_31 = arith.constant 0 : index
    %68 = vector.load %arg6[%c0_30, %c0_31] : memref<144x128xbf16, #tpu.memory_space<vmem>>, vector<144x128xbf16>
    %cst = arith.constant dense<0.000000e+00> : vector<16x128xf32>
    %69 = tpu.matmul %67, %68, %cst {dimension_numbers = #tpu.dot_dimension_numbers<[1], [0], [0], [1], [0, 0, 1, 1], [], []>} : vector<16x144xbf16>, vector<144x128xbf16>, vector<16x128xf32> -> vector<16x128xf32>
    %c0_32 = arith.constant 0 : index
    %c0_33 = arith.constant 0 : index
    %70 = vector.load %arg4[%c0_32, %c0_33] : memref<16x1xf32, #tpu.memory_space<vmem>>, vector<16x1xf32>
    %71 = vector.broadcast %70 : vector<16x1xf32> to vector<16x128xf32>
    %72 = arith.addf %69, %71 : vector<16x128xf32>
    %c0_34 = arith.constant 0 : index
    %c0_35 = arith.constant 0 : index
    %73 = vector.load %arg5[%c0_34, %c0_35] : memref<16x128xf32, #tpu.memory_space<vmem>>, vector<16x128xf32>
    tpu.vector_store %arg5[%c0_34, %c0_35], %72 {strides = array<i32>} : memref<16x128xf32, #tpu.memory_space<vmem>>, vector<16x128xf32>,
    return
  }
  func.func @transform_0(%arg0: i32) -> (i32, i32) {
    %c0_i32 = arith.constant 0 : i32
    %c0_i32_0 = arith.constant 0 : i32
    return %c0_i32, %arg0 : i32, i32
  }
  func.func @transform_1(%arg0: i32) -> (i32, i32, i32) {
    %c0_i32 = arith.constant 0 : i32
    %c0_i32_0 = arith.constant 0 : i32
    %c0_i32_1 = arith.constant 0 : i32
    %c0_i32_2 = arith.constant 0 : i32
    return %c0_i32, %c0_i32_0, %c0_i32_1 : i32, i32, i32
  }
  func.func @transform_2(%arg0: i32) -> (i32, i32) {
    %c0_i32 = arith.constant 0 : i32
    %c0_i32_0 = arith.constant 0 : i32
    %c0_i32_1 = arith.constant 0 : i32
    return %c0_i32, %c0_i32_0 : i32, i32
  }
  func.func @transform_3(%arg0: i32) -> (i32, i32) {
    %c0_i32 = arith.constant 0 : i32
    %c0_i32_0 = arith.constant 0 : i32
    %c0_i32_1 = arith.constant 0 : i32
    return %c0_i32, %c0_i32_0 : i32, i32
  }
  func.func @transform_4(%arg0: i32) -> (i32, i32) {
    %c0_i32 = arith.constant 0 : i32
    %c0_i32_0 = arith.constant 0 : i32
    return %c0_i32, %arg0 : i32, i32
  }
}

</mosaic_0001>

<llo_original>
// kernel: tpu_custom_call.1
$region0: #{tpu_custom_call.1}
  #allocation0 [shape = 'u32[]', space=smem, size = 0x4, offset = 0x4, fixed_abs, tag = 'smem constant byte address 0x4 - core index']
  #allocation1 [shape = 'u32[144,128]{1,0:T(1,128)}', space=vmem, size = 0x12000, scoped, tag = 'internal scratch']
  #allocation2 [shape = 'bf16[144,128]{1,0:T(16,128)(2,1)}', space=vmem, size = 0x9000, scoped, tag = 'scratch operand']
  %s0 = inlined_call_operand.vmem [shape: f32[16,128], index: 0, kind: input, shape index: {}]
  %s1 = inlined_call_operand.vmem [shape: bf16[9,1,128], index: 1, kind: input, shape index: {}]
  %s2 = inlined_call_operand.vmem [shape: bf16[16,144], index: 2, kind: input, shape index: {}]
  %s3 = inlined_call_operand.vmem [shape: f32[16,1], index: 3, kind: input, shape index: {}]
  %s4 = inlined_call_operand.hbm [shape: f32[16,128], index: 4, kind: output, shape index: {}]
  %s5 = sld [smem:[#allocation0]]
  $region26: #{tpu_custom_call.1} parent=0
    _
  %s7 = ssub.s32 1, %s5
  %s8 = scalar_select 0, %s7, %s5
  $region1: #{tpu_custom_call.1} parent=0
    #allocation3 [shape = 'u8[8192]{0}', space=vmem, size = 0x2000, scoped, tag = 'output window, operand 0, single buffered']
    #allocation4 [shape = 's32[1]{0}', space=sflag, size = 0x4, scoped, tag = 'scoped memory for tpu_custom_call.1']
    %9 = vsyncpa [#allocation4], 0
    // Predicated region
    $region2: #{tpu_custom_call.1} parent=1 // pred_check
      _
    $region3: #{tpu_custom_call.1} parent=1 // pred_check_branch
      %11 = sbr.rel (0) target = $region5
    $region4: #{tpu_custom_call.1} parent=1 // pred_region
      _
    $region5: #{tpu_custom_call.1} parent=1 // pred_fallthru
      _
    // Predicated region
    $region6: #{tpu_custom_call.1} parent=1 // pred_check
      _
    $region7: #{tpu_custom_call.1} parent=1 // pred_check_branch
      %13 = sbr.rel (0) target = $region9
    $region8: #{tpu_custom_call.1} parent=1 // pred_region
      _
    $region9: #{tpu_custom_call.1} parent=1 // pred_fallthru
      _
    // Predicated region
    $region10: #{tpu_custom_call.1} parent=1 // pred_check
      _
    $region11: #{tpu_custom_call.1} parent=1 // pred_check_branch
      %15 = sbr.rel (0) target = $region13
    $region12: #{tpu_custom_call.1} parent=1 // pred_region
      _
    $region13: #{tpu_custom_call.1} parent=1 // pred_fallthru
      _
    // Predicated region
    $region14: #{tpu_custom_call.1} parent=1 // pred_check
      _
    $region15: #{tpu_custom_call.1} parent=1 // pred_check_branch
      %17 = sbr.rel (0) target = $region17
    $region16: #{tpu_custom_call.1} parent=1 // pred_region
      _
    $region17: #{tpu_custom_call.1} parent=1 // pred_fallthru
      _
    %v19 = vld [vmem:[%s0] sm:$0xff]
    %v20 = vld [vmem:[%s0 + $0x8] sm:$0xff]
    %v21 = vpack.c.bf16 %v20, %v19
    %23 = vrot.lane.b32.xlu0 %v21, 9
    %v24 = vpop.permute.xlu0 %23
    %v27 = vld [vmem:[%s1] sm:$0x1]
    %v29 = vpack.i.b16 %v27, %v27
    %v31 = vlaneseq
    %v32 = vshrl.u32 %v31, 7
    %v33 = vsub.s32 0, %v32
    %v34 = vrot.slane %v29, %v33
    %v35 = vmul.bf16 %v24, %v34
    %36 = vst [vmem:[#allocation2] sm:$0xff] %v35
    %37 = vrot.lane.b32.xlu0 %v21, 8
    %v38 = vpop.permute.xlu0 %37
    %s41 = scalar_lea.vmem %s1, 1
    %v42 = vld [vmem:[%s41] sm:$0x1]
    %v44 = vpack.i.b16 %v42, %v42
    %v46 = vlaneseq
    %v47 = vshrl.u32 %v46, 7
    %v48 = vsub.s32 0, %v47
    %v49 = vrot.slane %v44, %v48
    %v50 = vmul.bf16 %v38, %v49
    %51 = vst [vmem:[#allocation2 + $0x8] sm:$0xff] %v50
    %52 = vrot.lane.b32.xlu0 %v21, 7
    %v53 = vpop.permute.xlu0 %52
    %s56 = scalar_lea.vmem %s1, 2
    %v57 = vld [vmem:[%s56] sm:$0x1]
    %v59 = vpack.i.b16 %v57, %v57
    %v61 = vlaneseq
    %v62 = vshrl.u32 %v61, 7
    %v63 = vsub.s32 0, %v62
    %v64 = vrot.slane %v59, %v63
    %v65 = vmul.bf16 %v53, %v64
    %66 = vst [vmem:[#allocation2 + $0x10] sm:$0xff] %v65
    %67 = vrot.lane.b32.xlu0 %v21, 1
    %v68 = vpop.permute.xlu0 %67
    %s71 = scalar_lea.vmem %s1, 3
    %v72 = vld [vmem:[%s71] sm:$0x1]
    %v74 = vpack.i.b16 %v72, %v72
    %v76 = vlaneseq
    %v77 = vshrl.u32 %v76, 7
    %v78 = vsub.s32 0, %v77
    %v79 = vrot.slane %v74, %v78
    %v80 = vmul.bf16 %v68, %v79
    %81 = vst [vmem:[#allocation2 + $0x18] sm:$0xff] %v80
    %82 = vst [vmem:[#allocation2 + $0x20] sm:$0xff] %v21
    %83 = vrot.lane.b32.xlu0 %v21, 127
    %v84 = vpop.permute.xlu0 %83
    %s87 = scalar_lea.vmem %s1, 5
    %v88 = vld [vmem:[%s87] sm:$0x1]
    %v90 = vpack.i.b16 %v88, %v88
    %v92 = vlaneseq
    %v93 = vshrl.u32 %v92, 7
    %v94 = vsub.s32 0, %v93
    %v95 = vrot.slane %v90, %v94
    %v96 = vmul.bf16 %v84, %v95
    %97 = vst [vmem:[#allocation2 + $0x28] sm:$0xff] %v96
    %98 = vrot.lane.b32.xlu0 %v21, 121
    %v99 = vpop.permute.xlu0 %98
    %s102 = scalar_lea.vmem %s1, 6
    %v103 = vld [vmem:[%s102] sm:$0x1]
    %v105 = vpack.i.b16 %v103, %v103
    %v107 = vlaneseq
    %v108 = vshrl.u32 %v107, 7
    %v109 = vsub.s32 0, %v108
    %v110 = vrot.slane %v105, %v109
    %v111 = vmul.bf16 %v99, %v110
    %112 = vst [vmem:[#allocation2 + $0x30] sm:$0xff] %v111
    %113 = vrot.lane.b32.xlu0 %v21, 120
    %v114 = vpop.permute.xlu0 %113
    %s117 = scalar_lea.vmem %s1, 7
    %v118 = vld [vmem:[%s117] sm:$0x1]
    %v120 = vpack.i.b16 %v118, %v118
    %v122 = vlaneseq
    %v123 = vshrl.u32 %v122, 7
    %v124 = vsub.s32 0, %v123
    %v125 = vrot.slane %v120, %v124
    %v126 = vmul.bf16 %v114, %v125
    %127 = vst [vmem:[#allocation2 + $0x38] sm:$0xff] %v126
    %128 = vrot.lane.b32.xlu0 %v21, 119
    %v129 = vpop.permute.xlu0 %128
    %s132 = scalar_lea.vmem %s1, 8
    %v133 = vld [vmem:[%s132] sm:$0x1]
    %v135 = vpack.i.b16 %v133, %v133
    %v137 = vlaneseq
    %v138 = vshrl.u32 %v137, 7
    %v139 = vsub.s32 0, %v138
    %v140 = vrot.slane %v135, %v139
    %v141 = vmul.bf16 %v129, %v140
    %142 = vst [vmem:[#allocation2 + $0x40] sm:$0xff] %v141
    %v143 = vld [vmem:[%s2] sm:$0xff]
    %v144 = vld [vmem:[%s2 + $0x8] sm:$0xff]
    %v145 = vld [vmem:[#allocation2] sm:$0xff]
    %v146 = vld [vmem:[#allocation2 + $0x8] sm:$0xff]
    %v147 = vld [vmem:[#allocation2 + $0x10] sm:$0xff]
    %v148 = vld [vmem:[#allocation2 + $0x18] sm:$0xff]
    %v149 = vld [vmem:[#allocation2 + $0x20] sm:$0xff]
    %v150 = vld [vmem:[#allocation2 + $0x28] sm:$0xff]
    %v151 = vld [vmem:[#allocation2 + $0x30] sm:$0xff]
    %v152 = vld [vmem:[#allocation2 + $0x38] sm:$0xff]
    %v153 = vld [vmem:[#allocation2 + $0x40] sm:$0xff]
    %v154 = vld [vmem:[%s3] sm:$0xff]
    %v155 = vld [vmem:[%s3 + $0x8] sm:$0xff]
    %157 = vset.pattern.permute.xlu0 0
    %158 = vperm.xlu0 %157, %v154
    %v159 = vpop.permute.xlu0 %158
    %162 = vset.pattern.permute.xlu0 0
    %163 = vperm.xlu0 %162, %v155
    %v164 = vpop.permute.xlu0 %163
    %v168 = vunpack.c.l.b16 %v143
    %v169 = vunpack.c.h.b16 %v143
    %v170 = vunpack.c.l.b16 %v144
    %v171 = vunpack.c.h.b16 %v144
    %v172 = vpack.c.b16 %v170, %v168
    %v173 = vpack.c.b16 %v171, %v169
    %vm175 = vcmask 130048
    %v177 = vsel %vm175, %v173, 0
    %179 = vmatprep.subr.bf16.mxu0 0
    %180 = vmatpush1.bf16.msra.mxu0 %v145
    %181 = vmatprep.subr.bf16.mxu0 0
    %182 = vmatpush1.bf16.msra.mxu0 %v146
    %183 = vmatprep.subr.bf16.mxu0 0
    %184 = vmatpush1.bf16.msra.mxu0 %v147
    %185 = vmatprep.subr.bf16.mxu0 0
    %186 = vmatpush1.bf16.msra.mxu0 %v148
    %187 = vmatprep.subr.bf16.mxu0 0
    %188 = vmatpush1.bf16.msra.mxu0 %v149
    %189 = vmatprep.subr.bf16.mxu0 0
    %190 = vmatpush1.bf16.msra.mxu0 %v150
    %191 = vmatprep.subr.bf16.mxu0 0
    %192 = vmatpush1.bf16.msra.mxu0 %v151
    %193 = vmatprep.subr.bf16.mxu0 0
    %194 = vmatpush1.bf16.msra.mxu0 %v152
    %195 = vmatprep.subr.bf16.mxu0 0
    %196 = vmatpush1.bf16.msra.mxu0 %v153
    %197 = vmatprep.subr.bf16.mxu0 0
    %198 = vmatpush1.bf16.msra.mxu0 0
    %199 = vmatprep.subr.bf16.mxu0 0
    %200 = vmatpush1.bf16.msra.mxu0 0
    %201 = vmatprep.subr.bf16.mxu0 0
    %202 = vmatpush1.bf16.msra.mxu0 0
    %203 = vmatprep.subr.bf16.mxu0 0
    %204 = vmatpush1.bf16.msra.mxu0 0
    %205 = vmatprep.subr.bf16.mxu0 0
    %206 = vmatpush1.bf16.msra.mxu0 0
    %207 = vmatprep.subr.bf16.mxu0 0
    %208 = vmatpush1.bf16.msra.mxu0 0
    %209 = vmatprep.subr.bf16.mxu0 0
    %210 = vmatpush1.bf16.msra.mxu0 0
    %211 = vmatprep.mubr.bf16.mxu0 %v177
    %212 = vmatmul.mubr.bf16.gmra.mrb[0].mxu0 %v172
    %v213 = vpop.f32.mrb[0].mxu0
    %v214 = vadd.f32 %v159, %v213
    %v215 = vpop.f32.mrb[0].mxu0
    %v216 = vpop.f32.mrb[0].mxu0
    %v217 = vadd.f32 %v164, %v216
    %v218 = vpop.f32.mrb[0].mxu0
    %219 = vdwg.mxu0
    %220 = vst [vmem:[#allocation3] sm:$0xff] %v214
    %221 = vst [vmem:[#allocation3 + $0x8] sm:$0xff] %v217
    // Predicated region
    $region18: #{tpu_custom_call.1} parent=1 // pred_check
      _
    $region19: #{tpu_custom_call.1} parent=1 // pred_check_branch
      %223 = sbr.rel (0) target = $region21
    $region20: #{tpu_custom_call.1} parent=1 // pred_region
      %s225 = ssub.s32 256, 256
      %226 = vsyncadd [#allocation4], %s225
      %s227 = sshll.u32 [#allocation3], 4
      %s228 = int_to_ptr.vmem [resolvable:$true] %s227
      %233 = dma.vmem_to_hbm [thread:$0]  %s228, 256, %s4, [#allocation4], 128, 128, 8
    $region21: #{tpu_custom_call.1} parent=1 // pred_fallthru
      _
    // Predicated region
    $region22: #{tpu_custom_call.1} parent=1 // pred_check
      _
    $region23: #{tpu_custom_call.1} parent=1 // pred_check_branch
      %235 = sbr.rel (0) target = $region25
    $region24: #{tpu_custom_call.1} parent=1 // pred_region
      %236 = dma.done [#allocation4], 256
    $region25: #{tpu_custom_call.1} parent=1 // pred_fallthru
      _
    %237 = vsyncpa [#allocation4], 1

</llo_original>
